<compile_context>
chip_gen: v7x
topology: tpu7x:2x2x1
jax: 0.10.0
libtpu: 0.0.40
codegen_flags: <defaults>
</compile_context>

<pallas_src>
import math

import jax
import jax.numpy as jnp
from jax import lax
from jax.experimental import pallas as pl
from jax.experimental.pallas import tpu as pltpu

BN_EPS = 1e-5   # torch.nn.BatchNorm1d default eps
LANE = 128      # TPU lane width


def encoder_fused_kernel(a_ref, x0_ref, p_ref, w1_ref, w2_ref, vec_ref,
                         out_ref,
                         xin_ref, ypre_ref, s1_ref, s2_ref, pooled_ref):
    """One grid step = (layer l, node-row tile r).

    a_ref    (tile_n, N) int8  : streamed row panel of (A + I)
    x0_ref   (N, Fp)     bf16  : layer-0 node features (zero-padded to Fp), resident
    p_ref    (G, N)      bf16  : global_add_pool one-hot matrix, resident
    w1_ref   (Fp, dim)   bf16  : current layer's first Linear (zero-padded rows)
    w2_ref   (dim, dim)  bf16  : current layer's second Linear
    vec_ref  (4, dim)    f32   : rows = [b1, b2, bn_gamma, bn_beta] of current layer
    out_ref  (G, W)      f32   : lane-dense pooled output slab, W = roundup(L*dim, 128)
    scratch  : xin (N,Fp) bf16, ypre (N,dim) f32, s1/s2 (1,dim) f32, pooled (L,G,dim) f32
    """
    l = pl.program_id(0)
    r = pl.program_id(1)
    num_row_tiles = pl.num_programs(1)

    n_total, fp = xin_ref.shape
    dim = ypre_ref.shape[1]
    num_layers, g, _ = pooled_ref.shape
    tile_n = a_ref.shape[0]
    inv_n = 1.0 / n_total                       # trace-time constant

    # ---- layer 0, tile 0: stage padded bf16 node features into the resident buffer --
    @pl.when(jnp.logical_and(l == 0, r == 0))
    def _():
        xin_ref[...] = x0_ref[...]

    # ---- start of every layer: reset BatchNorm sum / sum-of-squares accumulators ----
    @pl.when(r == 0)
    def _():
        s1_ref[...] = jnp.zeros_like(s1_ref)
        s2_ref[...] = jnp.zeros_like(s2_ref)

    # ---- per-row-tile compute: GIN aggregation + MLP + outer ReLU (pre-BatchNorm) ---
    # int8 -> bf16 upcast (exact for small integer edge counts); bf16 MXU, f32 accum.
    a_tile = a_ref[...].astype(jnp.float32).astype(jnp.bfloat16)
    h = jnp.dot(a_tile, xin_ref[...], preferred_element_type=jnp.float32)   # (A+I) @ x
    z = jnp.dot(h.astype(jnp.bfloat16), w1_ref[...],
                preferred_element_type=jnp.float32) + vec_ref[0:1, :]       # Linear1
    z = jnp.maximum(z, 0.0)                                                 # MLP ReLU
    z = jnp.dot(z.astype(jnp.bfloat16), w2_ref[...],
                preferred_element_type=jnp.float32) + vec_ref[1:2, :]       # Linear2
    y_pre = jnp.maximum(z, 0.0)                     # F.relu(conv(x, edge_index))

    row0 = pl.multiple_of(r * tile_n, tile_n)
    ypre_ref[pl.ds(row0, tile_n), :] = y_pre
    s1_ref[...] += jnp.sum(y_pre, axis=0, keepdims=True)
    s2_ref[...] += jnp.sum(y_pre * y_pre, axis=0, keepdims=True)

    # ---- end of layer: BatchNorm over ALL nodes, pool, stage next layer's input ----
    @pl.when(r == num_row_tiles - 1)
    def _():
        mean = s1_ref[...] * inv_n
        var = jnp.maximum(s2_ref[...] * inv_n - mean * mean, 0.0)   # clamp -> no NaN
        gamma = vec_ref[2:3, :]
        beta = vec_ref[3:4, :]
        y = (ypre_ref[...] - mean) * lax.rsqrt(var + BN_EPS) * gamma + beta
        yb = y.astype(jnp.bfloat16)         # single cast reused for pool + next layer
        pooled_ref[l] = jnp.dot(p_ref[...], yb, preferred_element_type=jnp.float32)
        if fp > dim:                        # keep padded feature columns zeroed
            yb = jnp.concatenate(
                [yb, jnp.zeros((n_total, fp - dim), jnp.bfloat16)], axis=1)
        xin_ref[...] = yb

    # ---- very last grid step: ONE full-width lane-dense store of the output slab ----
    @pl.when(jnp.logical_and(l == num_layers - 1, r == num_row_tiles - 1))
    def _():
        parts = [pooled_ref[i] for i in range(num_layers)]      # static leading indices
        pad = out_ref.shape[1] - num_layers * dim
        if pad:
            parts.append(jnp.zeros((g, pad), jnp.float32))
        out_ref[...] = jnp.concatenate(parts, axis=1)


def _pick_tile_n(n, requested=None, panel_budget_bytes=2 << 20):
    """Rows per streamed A panel.  Must divide n; multiples of 32 keep int8 tiling clean."""
    if requested is not None:
        assert n % requested == 0, (n, requested)
        return requested
    if n <= 256:
        return n
    t = min(n, max(32, panel_budget_bytes // n))
    t = (t // 32) * 32
    while t >= 32:
        if n % t == 0:
            return t
        t -= 32
    # TODO(synk): pad/mask ragged N instead of falling back to a full-row panel.
    return n


def encoder_forward(params, x, a_plus_i, p, *, tile_n=None):
    """Encoder.forward.

    params   : list of (w1, b1, w2, b2, gamma, beta) per GIN layer.
    x        : (N, F)  f32 node features
    a_plus_i : (N, N)  aggregation matrix A + I, A[dst, src] = #edges src->dst
               (entries must fit int8: edge multiplicity + self loop <= 127)
    p        : (G, N)  pooling matrix, P[g, n] = 1 iff batch[n] == g
    returns  : (G, num_layers * dim)
    """
    num_layers = len(params)
    dim = params[0][2].shape[1]
    n, f = x.shape
    g = p.shape[0]
    fp = max(f, dim)                                  # uniform feature width per layer
    out_width = ((num_layers * dim + LANE - 1) // LANE) * LANE
    tile_n = _pick_tile_n(n, tile_n)
    num_row_tiles = n // tile_n

    # ---- host-side packing -------------------------------------------------------
    a_i8 = a_plus_i.astype(jnp.int8)                  # exact small integers, 1 B/elem HBM
    p_bf = p.astype(jnp.bfloat16)                     # exact one-hot values
    x0p = jnp.pad(x, ((0, 0), (0, fp - f))).astype(jnp.bfloat16)

    w1s, w2s, vecs = [], [], []
    for (w1, b1, w2, b2, gamma, beta) in params:
        w1s.append(jnp.pad(w1, ((0, fp - w1.shape[0]), (0, 0))).astype(jnp.bfloat16))
        w2s.append(w2.astype(jnp.bfloat16))
        vecs.append(jnp.concatenate([b1, b2, gamma, beta], axis=0))
    w1s = jnp.stack(w1s)                              # (L, Fp, dim) bf16
    w2s = jnp.stack(w2s)                              # (L, dim, dim) bf16
    vecs = jnp.stack(vecs)                            # (L, 4, dim)  f32

    # ---- explicit VMEM budget (shrink tile_n if this would exceed the chip) -------
    est = (2 * tile_n * n                             # int8 A panels, double-buffered
           + 2 * n * fp * 2 + 2 * g * n * 2           # x0, P input blocks
           + 2 * (fp * dim + dim * dim) * 2 * 2       # per-layer w1/w2 blocks
           + 2 * 4 * dim * 4                          # per-layer bias/BN vector block
           + n * fp * 2 + n * dim * 4                 # xin, ypre scratch
           + (2 * dim + num_layers * g * dim + 2 * g * out_width) * 4)
    vmem_limit = int(min(max(2 * est, 16 * 2 ** 20), 64 * 2 ** 20))

    grid_spec = pltpu.PrefetchScalarGridSpec(
        num_scalar_prefetch=0,
        grid=(num_layers, num_row_tiles),             # layer outer, row-tile inner
        in_specs=[
            pl.BlockSpec((tile_n, n), lambda l, r: (r, 0)),         # A row panels (stream)
            pl.BlockSpec((n, fp), lambda l, r: (0, 0)),             # x0 (resident)
            pl.BlockSpec((g, n), lambda l, r: (0, 0)),              # P  (resident)
            pl.BlockSpec((None, fp, dim), lambda l, r: (l, 0, 0)),  # w1 of layer l
            pl.BlockSpec((None, dim, dim), lambda l, r: (l, 0, 0)), # w2 of layer l
            pl.BlockSpec((None, 4, dim), lambda l, r: (l, 0, 0)),   # b1/b2/gamma/beta
        ],
        out_specs=pl.BlockSpec((g, out_width), lambda l, r: (0, 0)),
        scratch_shapes=[
            pltpu.VMEM((n, fp), jnp.bfloat16),                 # aggregation input
            pltpu.VMEM((n, dim), jnp.float32),                 # pre-BN activations
            pltpu.VMEM((1, dim), jnp.float32),                 # BN sum
            pltpu.VMEM((1, dim), jnp.float32),                 # BN sum of squares
            pltpu.VMEM((num_layers, g, dim), jnp.float32),     # per-layer pooled outs
        ])

    out_padded = pl.pallas_call(
        encoder_fused_kernel,
        out_shape=jax.ShapeDtypeStruct((g, out_width), jnp.float32),
        grid_spec=grid_spec,
        compiler_params=pltpu.CompilerParams(
            dimension_semantics=("arbitrary", "arbitrary"),
            vmem_limit_bytes=vmem_limit),
    )(a_i8, x0p, p_bf, w1s, w2s, vecs)

    # drop the lane padding (kernel-side store is a single full-width lane-dense slab)
    return out_padded[:, :num_layers * dim]


def encoder_reference(params, x, a_plus_i, p, *, cast_bf16):
    """Pure-JAX reference.  cast_bf16=True mirrors the kernel's bf16 MXU inputs;
    cast_bf16=False is the exact f32 (PyTorch-semantics) reference."""
    def mx(lhs, rhs):
        if cast_bf16:
            lhs = lhs.astype(jnp.bfloat16)
            rhs = rhs.astype(jnp.bfloat16)
        return jnp.dot(lhs, rhs, preferred_element_type=jnp.float32)

    pools = []
    for (w1, b1, w2, b2, gamma, beta) in params:
        h = mx(a_plus_i, x)
        z = jnp.maximum(mx(h, w1) + b1, 0.0)
        z = mx(z, w2) + b2
        y = jnp.maximum(z, 0.0)
        mean = y.mean(0, keepdims=True)
        var = ((y - mean) ** 2).mean(0, keepdims=True)
        y = (y - mean) / jnp.sqrt(var + BN_EPS) * gamma + beta
        x = y
        pools.append(mx(p, y))
    return jnp.concatenate(pools, axis=1)


def init_linear(key, fan_in, fan_out):
    # matches torch.nn.Linear default init: U(-1/sqrt(fan_in), 1/sqrt(fan_in))
    k_w, k_b = jax.random.split(key)
    bound = 1.0 / math.sqrt(fan_in)
    w = jax.random.uniform(k_w, (fan_in, fan_out), jnp.float32, -bound, bound)
    b = jax.random.uniform(k_b, (1, fan_out), jnp.float32, -bound, bound)
    return w, b


def init_encoder_params(key, num_features, dim, num_gc_layers):
    params = []
    for i in range(num_gc_layers):
        key, k1, k2 = jax.random.split(key, 3)
        in_dim = num_features if i == 0 else dim
        w1, b1 = init_linear(k1, in_dim, dim)
        w2, b2 = init_linear(k2, dim, dim)
        gamma = jnp.ones((1, dim), jnp.float32)   # BatchNorm1d weight
        beta = jnp.zeros((1, dim), jnp.float32)   # BatchNorm1d bias
        params.append((w1, b1, w2, b2, gamma, beta))
    return params


if __name__ == "__main__":
    # small synthetic graph batch
    NUM_NODES = 128      # N
    NUM_FEATURES = 8     # num_features
    DIM = 32             # dim
    NUM_GC_LAYERS = 3    # num_gc_layers
    NUM_GRAPHS = 4       # graphs in the batch
    NUM_EDGES = 256      # E

    root = jax.random.PRNGKey(0)
    k_x, k_e, k_p = jax.random.split(root, 3)

    # node features [N, F]
    x = jax.random.normal(k_x, (NUM_NODES, NUM_FEATURES), jnp.float32)

    # edge_index [2, E]  (row 0 = source, row 1 = target)
    edge_index = jax.random.randint(k_e, (2, NUM_EDGES), 0, NUM_NODES, jnp.int32)

    # batch vector [N]: node -> graph id (contiguous blocks, like PyG)
    batch = jnp.repeat(jnp.arange(NUM_GRAPHS, dtype=jnp.int32),
                       NUM_NODES // NUM_GRAPHS)

    # dense aggregation matrix for GINConv: A[dst, src] += 1, plus (1+eps)*I with eps=0
    adj = jnp.zeros((NUM_NODES, NUM_NODES), jnp.float32)
    adj = adj.at[edge_index[1], edge_index[0]].add(1.0)
    a_plus_i = adj + jnp.eye(NUM_NODES, dtype=jnp.float32)
    assert float(jnp.max(a_plus_i)) <= 127.0     # int8 HBM storage is exact

    # pooling matrix for global_add_pool: P[g, n] = 1 iff batch[n] == g
    p_mat = (batch[None, :] == jnp.arange(NUM_GRAPHS, dtype=jnp.int32)[:, None]
             ).astype(jnp.float32)

    params = init_encoder_params(k_p, NUM_FEATURES, DIM, NUM_GC_LAYERS)

    # tile_n=64 -> 2 row tiles per layer: exercises the streamed-A + cross-tile BN path
    out = encoder_forward(params, x, a_plus_i, p_mat, tile_n=64)
    out = jax.block_until_ready(out)
    assert out.shape == (NUM_GRAPHS, NUM_GC_LAYERS * DIM), out.shape

    # 1) mechanics check: kernel vs a JAX reference applying the identical bf16 casts
    ref_bf16 = encoder_reference(params, x, a_plus_i, p_mat, cast_bf16=True)
    assert jnp.allclose(out, ref_bf16, rtol=1e-2, atol=1e-2), \
        float(jnp.abs(out - ref_bf16).max())

    # 2) semantics check vs the exact f32 (PyTorch) math
    ref_f32 = encoder_reference(params, x, a_plus_i, p_mat, cast_bf16=False)
    rel_err = float(jnp.linalg.norm(out - ref_f32) / jnp.linalg.norm(ref_f32))
    assert rel_err < 5e-2, rel_err

    print("KERNEL_OK")
</pallas_src>

<mosaic_0001>
module attributes {stable_mosaic.version = 11 : i64} {
  func.func @encoder_fused_kernel(%arg0: i32, %arg1: i32, %arg2: memref<64x128xi8, #tpu.memory_space<vmem>>, %arg3: memref<128x32xbf16, #tpu.memory_space<vmem>>, %arg4: memref<4x128xbf16, #tpu.memory_space<vmem>>, %arg5: memref<1x32x32xbf16, #tpu.memory_space<vmem>>, %arg6: memref<1x32x32xbf16, #tpu.memory_space<vmem>>, %arg7: memref<1x4x32xf32, #tpu.memory_space<vmem>>, %arg8: memref<4x128xf32, #tpu.memory_space<vmem>>, %arg9: memref<128x32xbf16, #tpu.memory_space<vmem>>, %arg10: memref<128x32xf32, #tpu.memory_space<vmem>>, %arg11: memref<1x32xf32, #tpu.memory_space<vmem>>, %arg12: memref<1x32xf32, #tpu.memory_space<vmem>>, %arg13: memref<3x4x32xf32, #tpu.memory_space<vmem>>) attributes {dimension_semantics = [#tpu.dimension_semantics<arbitrary>, #tpu.dimension_semantics<arbitrary>], iteration_bounds = array<i64: 3, 2>, scalar_prefetch = 0 : i64, scratch_operands = 5 : i64, tpu.core_type = #tpu.core_type<tc>, window_params = [{transform_indices = @transform_0, window_bounds = array<i64: 64, 128>}, {pipeline_mode = #tpu.pipeline_mode<synchronous>, transform_indices = @transform_1, window_bounds = array<i64: 128, 32>}, {pipeline_mode = #tpu.pipeline_mode<synchronous>, transform_indices = @transform_2, window_bounds = array<i64: 4, 128>}, {transform_indices = @transform_3, window_bounds = array<i64: 1, 32, 32>}, {transform_indices = @transform_4, window_bounds = array<i64: 1, 32, 32>}, {transform_indices = @transform_5, window_bounds = array<i64: 1, 4, 32>}, {pipeline_mode = #tpu.pipeline_mode<synchronous>, transform_indices = @transform_6, window_bounds = array<i64: 4, 128>}]} {
    %c0_i32 = arith.constant 0 : i32
    %0 = arith.cmpi eq, %arg0, %c0_i32 : i32
    %c0_i32_0 = arith.constant 0 : i32
    %1 = arith.cmpi eq, %arg1, %c0_i32_0 : i32
    %2 = arith.andi %0, %1 : i1
    %3 = arith.extui %2 : i1 to i32
    %c0_i32_1 = arith.constant 0 : i32
    %4 = arith.cmpi ne, %3, %c0_i32_1 : i32
    scf.if %4 {
      %c0_36 = arith.constant 0 : index
      %c0_37 = arith.constant 0 : index
      %56 = vector.load %arg3[%c0_36, %c0_37] : memref<128x32xbf16, #tpu.memory_space<vmem>>, vector<128x32xbf16>
      %c0_38 = arith.constant 0 : index
      %c0_39 = arith.constant 0 : index
      %57 = vector.load %arg9[%c0_38, %c0_39] : memref<128x32xbf16, #tpu.memory_space<vmem>>, vector<128x32xbf16>
      tpu.vector_store %arg9[%c0_38, %c0_39], %56 {strides = array<i32>} : memref<128x32xbf16, #tpu.memory_space<vmem>>, vector<128x32xbf16>,
    } else {
    }
    %c0_i32_2 = arith.constant 0 : i32
    %5 = arith.cmpi eq, %arg1, %c0_i32_2 : i32
    %6 = arith.extui %5 : i1 to i32
    %c0_i32_3 = arith.constant 0 : i32
    %7 = arith.cmpi ne, %6, %c0_i32_3 : i32
    scf.if %7 {
      %cst_36 = arith.constant 0.000000e+00 : f32
      %56 = vector.broadcast %cst_36 : f32 to vector<1x32xf32>
      %c0_37 = arith.constant 0 : index
      %c0_38 = arith.constant 0 : index
      %57 = vector.load %arg11[%c0_37, %c0_38] : memref<1x32xf32, #tpu.memory_space<vmem>>, vector<1x32xf32>
      tpu.vector_store %arg11[%c0_37, %c0_38], %56 {strides = array<i32>} : memref<1x32xf32, #tpu.memory_space<vmem>>, vector<1x32xf32>,
      %cst_39 = arith.constant 0.000000e+00 : f32
      %58 = vector.broadcast %cst_39 : f32 to vector<1x32xf32>
      %c0_40 = arith.constant 0 : index
      %c0_41 = arith.constant 0 : index
      %59 = vector.load %arg12[%c0_40, %c0_41] : memref<1x32xf32, #tpu.memory_space<vmem>>, vector<1x32xf32>
      tpu.vector_store %arg12[%c0_40, %c0_41], %58 {strides = array<i32>} : memref<1x32xf32, #tpu.memory_space<vmem>>, vector<1x32xf32>,
    } else {
    }
    %c0 = arith.constant 0 : index
    %c0_4 = arith.constant 0 : index
    %8 = vector.load %arg2[%c0, %c0_4] : memref<64x128xi8, #tpu.memory_space<vmem>>, vector<64x128xi8>
    %9 = arith.sitofp %8 : vector<64x128xi8> to vector<64x128xf32>
    %10 = arith.truncf %9 : vector<64x128xf32> to vector<64x128xbf16>
    %c0_5 = arith.constant 0 : index
    %c0_6 = arith.constant 0 : index
    %11 = vector.load %arg9[%c0_5, %c0_6] : memref<128x32xbf16, #tpu.memory_space<vmem>>, vector<128x32xbf16>
    %cst = arith.constant dense<0.000000e+00> : vector<64x32xf32>
    %12 = tpu.matmul %10, %11, %cst {dimension_numbers = #tpu.dot_dimension_numbers<[1], [0], [0], [1], [0, 0, 1, 1], [], []>} : vector<64x128xbf16>, vector<128x32xbf16>, vector<64x32xf32> -> vector<64x32xf32>
    %13 = arith.truncf %12 : vector<64x32xf32> to vector<64x32xbf16>
    %c0_7 = arith.constant 0 : index
    %c0_8 = arith.constant 0 : index
    %c0_9 = arith.constant 0 : index
    %14 = vector.load %arg5[%c0_7, %c0_8, %c0_9] : memref<1x32x32xbf16, #tpu.memory_space<vmem>>, vector<1x32x32xbf16>
    %15 = vector.shape_cast %14 : vector<1x32x32xbf16> to vector<32x32xbf16>
    %cst_10 = arith.constant dense<0.000000e+00> : vector<64x32xf32>
    %16 = tpu.matmul %13, %15, %cst_10 {dimension_numbers = #tpu.dot_dimension_numbers<[1], [0], [0], [1], [0, 0, 1, 1], [], []>} : vector<64x32xbf16>, vector<32x32xbf16>, vector<64x32xf32> -> vector<64x32xf32>
    %c0_11 = arith.constant 0 : index
    %c0_12 = arith.constant 0 : index
    %c0_13 = arith.constant 0 : index
    %17 = vector.load %arg7[%c0_11, %c0_12, %c0_13] : memref<1x4x32xf32, #tpu.memory_space<vmem>>, vector<1x1x32xf32>
    %18 = vector.shape_cast %17 : vector<1x1x32xf32> to vector<1x32xf32>
    %19 = vector.broadcast %18 : vector<1x32xf32> to vector<64x32xf32>
    %20 = arith.addf %16, %19 : vector<64x32xf32>
    %cst_14 = arith.constant 0.000000e+00 : f32
    %21 = vector.broadcast %cst_14 : f32 to vector<64x32xf32>
    %22 = arith.maximumf %20, %21 : vector<64x32xf32>
    %23 = arith.truncf %22 : vector<64x32xf32> to vector<64x32xbf16>
    %c0_15 = arith.constant 0 : index
    %c0_16 = arith.constant 0 : index
    %c0_17 = arith.constant 0 : index
    %24 = vector.load %arg6[%c0_15, %c0_16, %c0_17] : memref<1x32x32xbf16, #tpu.memory_space<vmem>>, vector<1x32x32xbf16>
    %25 = vector.shape_cast %24 : vector<1x32x32xbf16> to vector<32x32xbf16>
    %cst_18 = arith.constant dense<0.000000e+00> : vector<64x32xf32>
    %26 = tpu.matmul %23, %25, %cst_18 {dimension_numbers = #tpu.dot_dimension_numbers<[1], [0], [0], [1], [0, 0, 1, 1], [], []>} : vector<64x32xbf16>, vector<32x32xbf16>, vector<64x32xf32> -> vector<64x32xf32>
    %c0_19 = arith.constant 0 : index
    %c1 = arith.constant 1 : index
    %c0_20 = arith.constant 0 : index
    %27 = vector.load %arg7[%c0_19, %c1, %c0_20] : memref<1x4x32xf32, #tpu.memory_space<vmem>>, vector<1x1x32xf32>
    %28 = vector.shape_cast %27 : vector<1x1x32xf32> to vector<1x32xf32>
    %29 = vector.broadcast %28 : vector<1x32xf32> to vector<64x32xf32>
    %30 = arith.addf %26, %29 : vector<64x32xf32>
    %cst_21 = arith.constant 0.000000e+00 : f32
    %31 = vector.broadcast %cst_21 : f32 to vector<64x32xf32>
    %32 = arith.maximumf %30, %31 : vector<64x32xf32>
    %c64_i32 = arith.constant 64 : i32
    %33 = arith.muli %arg1, %c64_i32 : i32
    %34 = tpu.assume_multiple %33, 64 : i32
    %35 = arith.index_cast %34 : i32 to index
    %c0_22 = arith.constant 0 : index
    %36 = vector.load %arg10[%35, %c0_22] : memref<128x32xf32, #tpu.memory_space<vmem>>, vector<64x32xf32>
    tpu.vector_store %arg10[%35, %c0_22], %32 {strides = array<i32>} : memref<128x32xf32, #tpu.memory_space<vmem>>, vector<64x32xf32>,
    %c0_23 = arith.constant 0 : index
    %c0_24 = arith.constant 0 : index
    %37 = vector.load %arg11[%c0_23, %c0_24] : memref<1x32xf32, #tpu.memory_space<vmem>>, vector<1x32xf32>
    %cst_25 = arith.constant dense<0.000000e+00> : vector<32xf32>
    %38 = vector.multi_reduction <add>, %32, %cst_25 [0] : vector<64x32xf32> to vector<32xf32>
    %39 = vector.shape_cast %38 : vector<32xf32> to vector<1x32xf32>
    %40 = arith.addf %37, %39 : vector<1x32xf32>
    %c0_26 = arith.constant 0 : index
    %c0_27 = arith.constant 0 : index
    %41 = vector.load %arg11[%c0_26, %c0_27] : memref<1x32xf32, #tpu.memory_space<vmem>>, vector<1x32xf32>
    tpu.vector_store %arg11[%c0_26, %c0_27], %40 {strides = array<i32>} : memref<1x32xf32, #tpu.memory_space<vmem>>, vector<1x32xf32>,
    %c0_28 = arith.constant 0 : index
    %c0_29 = arith.constant 0 : index
    %42 = vector.load %arg12[%c0_28, %c0_29] : memref<1x32xf32, #tpu.memory_space<vmem>>, vector<1x32xf32>
    %43 = arith.mulf %32, %32 : vector<64x32xf32>
    %cst_30 = arith.constant dense<0.000000e+00> : vector<32xf32>
    %44 = vector.multi_reduction <add>, %43, %cst_30 [0] : vector<64x32xf32> to vector<32xf32>
    %45 = vector.shape_cast %44 : vector<32xf32> to vector<1x32xf32>
    %46 = arith.addf %42, %45 : vector<1x32xf32>
    %c0_31 = arith.constant 0 : index
    %c0_32 = arith.constant 0 : index
    %47 = vector.load %arg12[%c0_31, %c0_32] : memref<1x32xf32, #tpu.memory_space<vmem>>, vector<1x32xf32>
    tpu.vector_store %arg12[%c0_31, %c0_32], %46 {strides = array<i32>} : memref<1x32xf32, #tpu.memory_space<vmem>>, vector<1x32xf32>,
    %c1_i32 = arith.constant 1 : i32
    %48 = arith.cmpi eq, %arg1, %c1_i32 : i32
    %49 = arith.extui %48 : i1 to i32
    %c0_i32_33 = arith.constant 0 : i32
    %50 = arith.cmpi ne, %49, %c0_i32_33 : i32
    scf.if %50 {
      %c0_36 = arith.constant 0 : index
      %c0_37 = arith.constant 0 : index
      %56 = vector.load %arg11[%c0_36, %c0_37] : memref<1x32xf32, #tpu.memory_space<vmem>>, vector<1x32xf32>
      %cst_38 = arith.constant 7.812500e-03 : f32
      %57 = vector.broadcast %cst_38 : f32 to vector<1x32xf32>
      %58 = arith.mulf %56, %57 : vector<1x32xf32>
      %c0_39 = arith.constant 0 : index
      %c0_40 = arith.constant 0 : index
      %59 = vector.load %arg12[%c0_39, %c0_40] : memref<1x32xf32, #tpu.memory_space<vmem>>, vector<1x32xf32>
      %cst_41 = arith.constant 7.812500e-03 : f32
      %60 = vector.broadcast %cst_41 : f32 to vector<1x32xf32>
      %61 = arith.mulf %59, %60 : vector<1x32xf32>
      %62 = arith.mulf %58, %58 : vector<1x32xf32>
      %63 = arith.subf %61, %62 : vector<1x32xf32>
      %cst_42 = arith.constant 0.000000e+00 : f32
      %64 = vector.broadcast %cst_42 : f32 to vector<1x32xf32>
      %65 = arith.maximumf %63, %64 : vector<1x32xf32>
      %c0_43 = arith.constant 0 : index
      %c2 = arith.constant 2 : index
      %c0_44 = arith.constant 0 : index
      %66 = vector.load %arg7[%c0_43, %c2, %c0_44] : memref<1x4x32xf32, #tpu.memory_space<vmem>>, vector<1x1x32xf32>
      %67 = vector.shape_cast %66 : vector<1x1x32xf32> to vector<1x32xf32>
      %c0_45 = arith.constant 0 : index
      %c3 = arith.constant 3 : index
      %c0_46 = arith.constant 0 : index
      %68 = vector.load %arg7[%c0_45, %c3, %c0_46] : memref<1x4x32xf32, #tpu.memory_space<vmem>>, vector<1x1x32xf32>
      %69 = vector.shape_cast %68 : vector<1x1x32xf32> to vector<1x32xf32>
      %c0_47 = arith.constant 0 : index
      %c0_48 = arith.constant 0 : index
      %70 = vector.load %arg10[%c0_47, %c0_48] : memref<128x32xf32, #tpu.memory_space<vmem>>, vector<128x32xf32>
      %71 = vector.broadcast %58 : vector<1x32xf32> to vector<128x32xf32>
      %72 = arith.subf %70, %71 : vector<128x32xf32>
      %cst_49 = arith.constant 9.99999974E-6 : f32
      %73 = vector.broadcast %cst_49 : f32 to vector<1x32xf32>
      %74 = arith.addf %65, %73 : vector<1x32xf32>
      %75 = math.rsqrt %74 : vector<1x32xf32>
      %76 = vector.broadcast %75 : vector<1x32xf32> to vector<128x32xf32>
      %77 = arith.mulf %72, %76 : vector<128x32xf32>
      %78 = vector.broadcast %67 : vector<1x32xf32> to vector<128x32xf32>
      %79 = arith.mulf %77, %78 : vector<128x32xf32>
      %80 = vector.broadcast %69 : vector<1x32xf32> to vector<128x32xf32>
      %81 = arith.addf %79, %80 : vector<128x32xf32>
      %82 = arith.truncf %81 : vector<128x32xf32> to vector<128x32xbf16>
      %c0_50 = arith.constant 0 : index
      %c0_51 = arith.constant 0 : index
      %83 = vector.load %arg4[%c0_50, %c0_51] : memref<4x128xbf16, #tpu.memory_space<vmem>>, vector<4x128xbf16>
      %cst_52 = arith.constant dense<0.000000e+00> : vector<4x32xf32>
      %84 = tpu.matmul %83, %82, %cst_52 {dimension_numbers = #tpu.dot_dimension_numbers<[1], [0], [0], [1], [0, 0, 1, 1], [], []>} : vector<4x128xbf16>, vector<128x32xbf16>, vector<4x32xf32> -> vector<4x32xf32>
      %85 = arith.index_cast %arg0 : i32 to index
      %c0_53 = arith.constant 0 : index
      %c0_54 = arith.constant 0 : index
      %86 = vector.load %arg13[%85, %c0_53, %c0_54] : memref<3x4x32xf32, #tpu.memory_space<vmem>>, vector<1x4x32xf32>
      %87 = vector.shape_cast %86 : vector<1x4x32xf32> to vector<4x32xf32>
      %88 = vector.shape_cast %84 : vector<4x32xf32> to vector<1x4x32xf32>
      tpu.vector_store %arg13[%85, %c0_53, %c0_54], %88 {strides = array<i32>} : memref<3x4x32xf32, #tpu.memory_space<vmem>>, vector<1x4x32xf32>,
      %c0_55 = arith.constant 0 : index
      %c0_56 = arith.constant 0 : index
      %89 = vector.load %arg9[%c0_55, %c0_56] : memref<128x32xbf16, #tpu.memory_space<vmem>>, vector<128x32xbf16>
      tpu.vector_store %arg9[%c0_55, %c0_56], %82 {strides = array<i32>} : memref<128x32xbf16, #tpu.memory_space<vmem>>, vector<128x32xbf16>,
    } else {
    }
    %c2_i32 = arith.constant 2 : i32
    %51 = arith.cmpi eq, %arg0, %c2_i32 : i32
    %c1_i32_34 = arith.constant 1 : i32
    %52 = arith.cmpi eq, %arg1, %c1_i32_34 : i32
    %53 = arith.andi %51, %52 : i1
    %54 = arith.extui %53 : i1 to i32
    %c0_i32_35 = arith.constant 0 : i32
    %55 = arith.cmpi ne, %54, %c0_i32_35 : i32
    scf.if %55 {
      %c0_36 = arith.constant 0 : index
      %c0_37 = arith.constant 0 : index
      %c0_38 = arith.constant 0 : index
      %56 = vector.load %arg13[%c0_36, %c0_37, %c0_38] : memref<3x4x32xf32, #tpu.memory_space<vmem>>, vector<1x4x32xf32>
      %57 = vector.shape_cast %56 : vector<1x4x32xf32> to vector<4x32xf32>
      %c1_39 = arith.constant 1 : index
      %c0_40 = arith.constant 0 : index
      %c0_41 = arith.constant 0 : index
      %58 = vector.load %arg13[%c1_39, %c0_40, %c0_41] : memref<3x4x32xf32, #tpu.memory_space<vmem>>, vector<1x4x32xf32>
      %59 = vector.shape_cast %58 : vector<1x4x32xf32> to vector<4x32xf32>
      %c2 = arith.constant 2 : index
      %c0_42 = arith.constant 0 : index
      %c0_43 = arith.constant 0 : index
      %60 = vector.load %arg13[%c2, %c0_42, %c0_43] : memref<3x4x32xf32, #tpu.memory_space<vmem>>, vector<1x4x32xf32>
      %61 = vector.shape_cast %60 : vector<1x4x32xf32> to vector<4x32xf32>
      %cst_44 = arith.constant 0.000000e+00 : f32
      %62 = vector.broadcast %cst_44 : f32 to vector<4x32xf32>
      %63 = tpu.concatenate %57, %59, %61, %62 in 1 : vector<4x32xf32>, vector<4x32xf32>, vector<4x32xf32>, vector<4x32xf32> -> vector<4x128xf32>
      %c0_45 = arith.constant 0 : index
      %c0_46 = arith.constant 0 : index
      %64 = vector.load %arg8[%c0_45, %c0_46] : memref<4x128xf32, #tpu.memory_space<vmem>>, vector<4x128xf32>
      tpu.vector_store %arg8[%c0_45, %c0_46], %63 {strides = array<i32>} : memref<4x128xf32, #tpu.memory_space<vmem>>, vector<4x128xf32>,
    } else {
    }
    return
  }
  func.func @transform_0(%arg0: i32, %arg1: i32) -> (i32, i32) {
    %c0_i32 = arith.constant 0 : i32
    %c0_i32_0 = arith.constant 0 : i32
    return %arg1, %c0_i32 : i32, i32
  }
  func.func @transform_1(%arg0: i32, %arg1: i32) -> (i32, i32) {
    %c0_i32 = arith.constant 0 : i32
    %c0_i32_0 = arith.constant 0 : i32
    %c0_i32_1 = arith.constant 0 : i32
    return %c0_i32, %c0_i32_0 : i32, i32
  }
  func.func @transform_2(%arg0: i32, %arg1: i32) -> (i32, i32) {
    %c0_i32 = arith.constant 0 : i32
    %c0_i32_0 = arith.constant 0 : i32
    %c0_i32_1 = arith.constant 0 : i32
    return %c0_i32, %c0_i32_0 : i32, i32
  }
  func.func @transform_3(%arg0: i32, %arg1: i32) -> (i32, i32, i32) {
    %c0_i32 = arith.constant 0 : i32
    %c0_i32_0 = arith.constant 0 : i32
    %c0_i32_1 = arith.constant 0 : i32
    return %arg0, %c0_i32, %c0_i32_0 : i32, i32, i32
  }
  func.func @transform_4(%arg0: i32, %arg1: i32) -> (i32, i32, i32) {
    %c0_i32 = arith.constant 0 : i32
    %c0_i32_0 = arith.constant 0 : i32
    %c0_i32_1 = arith.constant 0 : i32
    return %arg0, %c0_i32, %c0_i32_0 : i32, i32, i32
  }
  func.func @transform_5(%arg0: i32, %arg1: i32) -> (i32, i32, i32) {
    %c0_i32 = arith.constant 0 : i32
    %c0_i32_0 = arith.constant 0 : i32
    %c0_i32_1 = arith.constant 0 : i32
    return %arg0, %c0_i32, %c0_i32_0 : i32, i32, i32
  }
  func.func @transform_6(%arg0: i32, %arg1: i32) -> (i32, i32) {
    %c0_i32 = arith.constant 0 : i32
    %c0_i32_0 = arith.constant 0 : i32
    %c0_i32_1 = arith.constant 0 : i32
    return %c0_i32, %c0_i32_0 : i32, i32
  }
}

</mosaic_0001>

<llo_original>
// kernel: tpu_custom_call.1
$region0: #{tpu_custom_call.1}
  #allocation0 [shape = 'u32[]', space=smem, size = 0x4, offset = 0x4, fixed_abs, tag = 'smem constant byte address 0x4 - core index']
  #allocation1 [shape = 'u32[144,128]{1,0:T(1,128)}', space=vmem, size = 0x12000, scoped, tag = 'internal scratch']
  #allocation2 [shape = 'bf16[128,32]{1,0:T(16,128)(2,1)}', space=vmem, size = 0x8000, scoped, tag = 'scratch operand']
  #allocation3 [shape = 'f32[128,32]{1,0:T(8,128)}', space=vmem, size = 0x10000, scoped, tag = 'scratch operand']
  #allocation4 [shape = 'f32[1,32]{1,0:T(1,128)}', space=vmem, size = 0x200, scoped, tag = 'scratch operand']
  #allocation5 [shape = 'f32[1,32]{1,0:T(1,128)}', space=vmem, size = 0x200, scoped, tag = 'scratch operand']
  #allocation6 [shape = 'f32[3,4,32]{2,1,0:T(4,128)}', space=vmem, size = 0x1800, scoped, tag = 'scratch operand']
  %s0 = inlined_call_operand.vmem [shape: s8[128,128], index: 0, kind: input, shape index: {}]
  %s1 = inlined_call_operand.vmem [shape: bf16[128,32], index: 1, kind: input, shape index: {}]
  %s2 = inlined_call_operand.vmem [shape: bf16[4,128], index: 2, kind: input, shape index: {}]
  %s3 = inlined_call_operand.vmem [shape: bf16[3,32,32], index: 3, kind: input, shape index: {}]
  %s4 = inlined_call_operand.hbm [shape: bf16[3,32,32], index: 4, kind: input, shape index: {}]
  %s5 = inlined_call_operand.vmem [shape: f32[3,4,32], index: 5, kind: input, shape index: {}]
  %s6 = inlined_call_operand.hbm [shape: f32[4,128], index: 6, kind: output, shape index: {}]
  %s7 = sld [smem:[#allocation0]]
  $region77: #{tpu_custom_call.1} parent=0
    _
  %s9 = ssub.s32 1, %s7
  %s10 = scalar_select 0, %s9, %s7
  $region1: #{tpu_custom_call.1} parent=0
    #allocation7 [shape = 'u8[16384]{0}', space=vmem, size = 0x4000, scoped, tag = 'input window, operand 4']
    #allocation8 [shape = 's32[2]{0}', space=sflag, size = 0x8, scoped, tag = 'scoped memory for tpu_custom_call.1']
    #allocation9 [shape = 's32[2]{0}', space=sflag, size = 0x8, scoped, tag = 'scoped memory for tpu_custom_call.1']
    #allocation10 [shape = 'u8[2048]{0}', space=vmem, size = 0x800, scoped, tag = 'output window, operand 0, single buffered']
    %11 = vsyncpa [#allocation8], 0
    %s12 = scalar_lea.sflag [#allocation8], 1
    %13 = vsyncpa %s12, 0
    %14 = vsyncpa [#allocation9], 0
    loop: start=0, step=1, limit=8
    $region2: #{tpu_custom_call.1} parent=1 // loop_pre_header
      _
    $region3: #{tpu_custom_call.1} parent=1 // loop_header
      %s16 = sphi 0, %s20
      %p17 = scmp.ge.s32.totalorder %s16, 8
      %s23 = sphi 0, %s35
      %s24 = sphi 0, %s31
      %s25 = sphi 0, %s23
      %s26 = sphi 0, %s24
      %s27 = sphi 0, %s25
      %s28 = sphi 0, %s26
      %s38 = sphi 0, %s40
      %s41 = sphi 0, %s38
      %s42 = sphi 0, %s41
      %s58 = sphi 0, %s42
      %s62 = sphi 0, %s62
      %s64 = sphi 0, %s62
      %s65 = sphi 0, %s64
      %s79 = sphi 0, %s65
      %s83 = sphi 0, %s83
      %s85 = sphi 0, %s83
      %s86 = sphi 0, %s85
      %s100 = sphi 0, %s86
      %s106 = sphi 0, %s108
      %s109 = sphi 0, %s106
      %s110 = sphi 0, %s109
      %s126 = sphi 0, %s110
      %s132 = sphi 0, %s134
      %s135 = sphi 0, %s132
      %s136 = sphi 0, %s135
      %s152 = sphi 0, %s136
      %s158 = sphi 0, %s160
      %s161 = sphi 0, %s158
      %s162 = sphi 0, %s161
      %s178 = sphi 0, %s162
      %s182 = sphi 0, %s182
      %s184 = sphi 0, %s182
      %s185 = sphi 0, %s184
      %s199 = sphi 0, %s185
    $region4: #{tpu_custom_call.1} parent=1 // loop_header_branch
      %19 = sbr.rel (%p17) target = $region8
    $region5: #{tpu_custom_call.1} parent=1 // loop_body
      %s21 = ssub.s32 %s16, 1
      %s22 = ssub.s32 %s16, 2
      %s29 = sadd.s32 1, %s24
      %p30 = scmp.ge.s32.totalorder %s29, 2
      %s31 = scalar_select %p30, 0, %s29
      %s32 = sadd.s32 1, %s23
      %s33 = scalar_select %p30, %s32, %s23
      %p34 = scmp.ge.s32.totalorder %s33, 3
      %s35 = scalar_select %p34, 0, %s33
      %s36 = ssub.s32 %s24, %s31
      %p37 = scmp.eq.s32.totalorder %s36, 0
      %s39 = sadd.s32 %s38, 1
      %s40 = scalar_select %p37, %s38, %s39
      %p43 = pneg %p37
      %p44 = scmp.eq.s32.totalorder %s16, 5
      %p45 = por %p43, %p44
      %p46 = scmp.ne.s32.totalorder %s38, %s41
      %p47 = scmp.eq.s32.totalorder %s16, 0
      %p48 = por %p46, %p47
      %p49 = scmp.ne.s32.totalorder %s38, %s41
      %p50 = scmp.eq.s32.totalorder %s21, 5
      %p51 = por %p49, %p50
      %p52 = scmp.ne.s32.totalorder %s41, %s42
      %p53 = scmp.eq.s32.totalorder %s21, 0
      %p54 = por %p52, %p53
      %p55 = scmp.ne.s32.totalorder %s41, %s42
      %p56 = scmp.eq.s32.totalorder %s22, 5
      %p57 = por %p55, %p56
      %p59 = scmp.ne.s32.totalorder %s42, %s58
      %p60 = scmp.eq.s32.totalorder %s22, 0
      %p61 = por %p59, %p60
      %s63 = sadd.s32 %s62, 1
      %p66 = scmp.eq.s32.totalorder %s16, 5
      %p67 = scmp.ne.s32.totalorder %s62, %s64
      %p68 = scmp.eq.s32.totalorder %s16, 0
      %p69 = por %p67, %p68
      %p70 = scmp.ne.s32.totalorder %s62, %s64
      %p71 = scmp.eq.s32.totalorder %s21, 5
      %p72 = por %p70, %p71
      %p73 = scmp.ne.s32.totalorder %s64, %s65
      %p74 = scmp.eq.s32.totalorder %s21, 0
      %p75 = por %p73, %p74
      %p76 = scmp.ne.s32.totalorder %s64, %s65
      %p77 = scmp.eq.s32.totalorder %s22, 5
      %p78 = por %p76, %p77
      %p80 = scmp.ne.s32.totalorder %s65, %s79
      %p81 = scmp.eq.s32.totalorder %s22, 0
      %p82 = por %p80, %p81
      %s84 = sadd.s32 %s83, 1
      %p87 = scmp.eq.s32.totalorder %s16, 5
      %p88 = scmp.ne.s32.totalorder %s83, %s85
      %p89 = scmp.eq.s32.totalorder %s16, 0
      %p90 = por %p88, %p89
      %p91 = scmp.ne.s32.totalorder %s83, %s85
      %p92 = scmp.eq.s32.totalorder %s21, 5
      %p93 = por %p91, %p92
      %p94 = scmp.ne.s32.totalorder %s85, %s86
      %p95 = scmp.eq.s32.totalorder %s21, 0
      %p96 = por %p94, %p95
      %p97 = scmp.ne.s32.totalorder %s85, %s86
      %p98 = scmp.eq.s32.totalorder %s22, 5
      %p99 = por %p97, %p98
      %p101 = scmp.ne.s32.totalorder %s86, %s100
      %p102 = scmp.eq.s32.totalorder %s22, 0
      %p103 = por %p101, %p102
      %s104 = ssub.s32 %s23, %s35
      %p105 = scmp.eq.s32.totalorder %s104, 0
      %s107 = sadd.s32 %s106, 1
      %s108 = scalar_select %p105, %s106, %s107
      %p111 = pneg %p105
      %p112 = scmp.eq.s32.totalorder %s16, 5
      %p113 = por %p111, %p112
      %p114 = scmp.ne.s32.totalorder %s106, %s109
      %p115 = scmp.eq.s32.totalorder %s16, 0
      %p116 = por %p114, %p115
      %p117 = scmp.ne.s32.totalorder %s106, %s109
      %p118 = scmp.eq.s32.totalorder %s21, 5
      %p119 = por %p117, %p118
      %p120 = scmp.ne.s32.totalorder %s109, %s110
      %p121 = scmp.eq.s32.totalorder %s21, 0
      %p122 = por %p120, %p121
      %p123 = scmp.ne.s32.totalorder %s109, %s110
      %p124 = scmp.eq.s32.totalorder %s22, 5
      %p125 = por %p123, %p124
      %p127 = scmp.ne.s32.totalorder %s110, %s126
      %p128 = scmp.eq.s32.totalorder %s22, 0
      %p129 = por %p127, %p128
      %s130 = ssub.s32 %s23, %s35
      %p131 = scmp.eq.s32.totalorder %s130, 0
      %s133 = sadd.s32 %s132, 1
      %s134 = scalar_select %p131, %s132, %s133
      %p137 = pneg %p131
      %p138 = scmp.eq.s32.totalorder %s16, 5
      %p139 = por %p137, %p138
      %p140 = scmp.ne.s32.totalorder %s132, %s135
      %p141 = scmp.eq.s32.totalorder %s16, 0
      %p142 = por %p140, %p141
      %p143 = scmp.ne.s32.totalorder %s132, %s135
      %p144 = scmp.eq.s32.totalorder %s21, 5
      %p145 = por %p143, %p144
      %p146 = scmp.ne.s32.totalorder %s135, %s136
      %p147 = scmp.eq.s32.totalorder %s21, 0
      %p148 = por %p146, %p147
      %p149 = scmp.ne.s32.totalorder %s135, %s136
      %p150 = scmp.eq.s32.totalorder %s22, 5
      %p151 = por %p149, %p150
      %p153 = scmp.ne.s32.totalorder %s136, %s152
      %p154 = scmp.eq.s32.totalorder %s22, 0
      %p155 = por %p153, %p154
      %s156 = ssub.s32 %s23, %s35
      %p157 = scmp.eq.s32.totalorder %s156, 0
      %s159 = sadd.s32 %s158, 1
      %s160 = scalar_select %p157, %s158, %s159
      %p163 = pneg %p157
      %p164 = scmp.eq.s32.totalorder %s16, 5
      %p165 = por %p163, %p164
      %p166 = scmp.ne.s32.totalorder %s158, %s161
      %p167 = scmp.eq.s32.totalorder %s16, 0
      %p168 = por %p166, %p167
      %p169 = scmp.ne.s32.totalorder %s158, %s161
      %p170 = scmp.eq.s32.totalorder %s21, 5
      %p171 = por %p169, %p170
      %p172 = scmp.ne.s32.totalorder %s161, %s162
      %p173 = scmp.eq.s32.totalorder %s21, 0
      %p174 = por %p172, %p173
      %p175 = scmp.ne.s32.totalorder %s161, %s162
      %p176 = scmp.eq.s32.totalorder %s22, 5
      %p177 = por %p175, %p176
      %p179 = scmp.ne.s32.totalorder %s162, %s178
      %p180 = scmp.eq.s32.totalorder %s22, 0
      %p181 = por %p179, %p180
      %s183 = sadd.s32 %s182, 1
      %p186 = scmp.eq.s32.totalorder %s16, 5
      %p187 = scmp.ne.s32.totalorder %s182, %s184
      %p188 = scmp.eq.s32.totalorder %s16, 0
      %p189 = por %p187, %p188
      %p190 = scmp.ne.s32.totalorder %s182, %s184
      %p191 = scmp.eq.s32.totalorder %s21, 5
      %p192 = por %p190, %p191
      %p193 = scmp.ne.s32.totalorder %s184, %s185
      %p194 = scmp.eq.s32.totalorder %s21, 0
      %p195 = por %p193, %p194
      %p196 = scmp.ne.s32.totalorder %s184, %s185
      %p197 = scmp.eq.s32.totalorder %s22, 5
      %p198 = por %p196, %p197
      %p200 = scmp.ne.s32.totalorder %s185, %s199
      %p201 = scmp.eq.s32.totalorder %s22, 0
      %p202 = por %p200, %p201
      %p203 = scmp.le.s32.totalorder 1, %s16
      %p204 = scmp.lt.s32.totalorder %s16, 7
      %p205 = pnand %p203, %p204
      %p206 = pneg %p205
      // Predicated region
      $region9: #{tpu_custom_call.1} parent=5 // pred_check
        _
      $region10: #{tpu_custom_call.1} parent=5 // pred_check_branch
        %208 = sbr.rel (%p205) target = $region12
      $region11: #{tpu_custom_call.1} parent=5 // pred_region
        %s209 = ssub.s32 %s16, 1
        // Predicated region
        $region13: #{tpu_custom_call.1} parent=11 // pred_check
          %p210 = pneg %p75
        $region14: #{tpu_custom_call.1} parent=11 // pred_check_branch
          %212 = sbr.rel (%p210) target = $region16
        $region15: #{tpu_custom_call.1} parent=11 // pred_region
          _
        $region16: #{tpu_custom_call.1} parent=11 // pred_fallthru
          _
        // Predicated region
        $region17: #{tpu_custom_call.1} parent=11 // pred_check
          %p213 = pneg %p96
        $region18: #{tpu_custom_call.1} parent=11 // pred_check_branch
          %215 = sbr.rel (%p213) target = $region20
        $region19: #{tpu_custom_call.1} parent=11 // pred_region
          _
        $region20: #{tpu_custom_call.1} parent=11 // pred_fallthru
          _
      $region12: #{tpu_custom_call.1} parent=5 // pred_fallthru
        _
      %p216 = scmp.lt.s32.totalorder %s16, 6
      // Predicated region
      $region21: #{tpu_custom_call.1} parent=5 // pred_check
        %p217 = pneg %p216
      $region22: #{tpu_custom_call.1} parent=5 // pred_check_branch
        %219 = sbr.rel (%p217) target = $region24
      $region23: #{tpu_custom_call.1} parent=5 // pred_region
        // Predicated region
        $region25: #{tpu_custom_call.1} parent=23 // pred_check
          %p220 = pneg %p48
        $region26: #{tpu_custom_call.1} parent=23 // pred_check_branch
          %222 = sbr.rel (%p220) target = $region28
        $region27: #{tpu_custom_call.1} parent=23 // pred_region
          %s223 = smul.u32 2, %s24
          %p224 = scmp.lt.s32.totalorder %s223, 3
          %s225 = scalar_select %p224, %s223, 3
          %s226 = smul.addr %s225, 8
          %s227 = scalar_lea.vmem %s0, %s226
          %s228 = smul.u32 2, %s24
        $region28: #{tpu_custom_call.1} parent=23 // pred_fallthru
          _
        // Predicated region
        $region29: #{tpu_custom_call.1} parent=23 // pred_check
          %p229 = pneg %p116
        $region30: #{tpu_custom_call.1} parent=23 // pred_check_branch
          %231 = sbr.rel (%p229) target = $region32
        $region31: #{tpu_custom_call.1} parent=23 // pred_region
          %p232 = scmp.lt.s32.totalorder %s23, 2
          %s233 = scalar_select %p232, %s23, 2
          %s234 = smul.addr %s233, 4
          %s235 = smul.addr %s234, 4
          %s236 = scalar_lea.vmem %s3, %s235
        $region32: #{tpu_custom_call.1} parent=23 // pred_fallthru
          _
        // Predicated region
        $region33: #{tpu_custom_call.1} parent=23 // pred_check
          %p237 = pneg %p142
        $region34: #{tpu_custom_call.1} parent=23 // pred_check_branch
          %239 = sbr.rel (%p237) target = $region36
        $region35: #{tpu_custom_call.1} parent=23 // pred_region
          %s240 = sand.u32 %s132, 1
          %s241 = scalar_lea.sflag [#allocation8], %s240
          %s242 = sand.u32 %s132, 1
          %s243 = smul.addr %s242, 16
          %s244 = scalar_lea.vmem [#allocation7], %s243
          %s246 = ssub.s32 256, 256
          %247 = vsyncadd %s241, %s246
          %s248 = smul.addr %s23, 4
          %s249 = smul.addr %s248, 64
          %s250 = scalar_lea.hbm %s4, %s249
          %s251 = sshll.u32 %s244, 4
          %s252 = int_to_ptr.vmem [resolvable:$true] %s251
          %257 = dma.hbm_to_vmem [thread:$0]  %s250, 256, %s252, %s241, 64, 64, 4
        $region36: #{tpu_custom_call.1} parent=23 // pred_fallthru
          _
        // Predicated region
        $region37: #{tpu_custom_call.1} parent=23 // pred_check
          %p258 = pneg %p168
        $region38: #{tpu_custom_call.1} parent=23 // pred_check_branch
          %260 = sbr.rel (%p258) target = $region40
        $region39: #{tpu_custom_call.1} parent=23 // pred_region
          %p261 = scmp.lt.s32.totalorder %s23, 2
          %s262 = scalar_select %p261, %s23, 2
          %s263 = smul.addr %s262, 4
          %s264 = scalar_lea.vmem %s5, %s263
        $region40: #{tpu_custom_call.1} parent=23 // pred_fallthru
          _
      $region24: #{tpu_custom_call.1} parent=5 // pred_fallthru
        _
      %p265 = scmp.le.s32.totalorder 1, %s16
      %p266 = scmp.lt.s32.totalorder %s16, 7
      %p267 = pnand %p265, %p266
      %p268 = pneg %p267
      // Predicated region
      $region41: #{tpu_custom_call.1} parent=5 // pred_check
        _
      $region42: #{tpu_custom_call.1} parent=5 // pred_check_branch
        %270 = sbr.rel (%p267) target = $region44
      $region43: #{tpu_custom_call.1} parent=5 // pred_region
        %s271 = ssub.s32 %s16, 1
        %s272 = sand.u32 %s135, 1
        %s273 = scalar_lea.sflag [#allocation8], %s272
        %s274 = sand.u32 %s135, 1
        %s275 = smul.addr %s274, 16
        %s276 = scalar_lea.vmem [#allocation7], %s275
        // Predicated region
        $region45: #{tpu_custom_call.1} parent=43 // pred_check
          %p277 = pneg %p148
        $region46: #{tpu_custom_call.1} parent=43 // pred_check_branch
          %279 = sbr.rel (%p277) target = $region48
        $region47: #{tpu_custom_call.1} parent=43 // pred_region
          %280 = dma.done %s273, 256
        $region48: #{tpu_custom_call.1} parent=43 // pred_fallthru
          _
        %s281 = smul.u32 2, %s26
        %p282 = scmp.lt.s32.totalorder %s281, 3
        %s283 = scalar_select %p282, %s281, 3
        %s284 = smul.addr %s283, 8
        %s285 = scalar_lea.vmem %s0, %s284
        %p286 = pneg %p54
        %p287 = pneg %p51
        %p288 = pneg %p75
        %p289 = pneg %p72
        %p290 = pneg %p96
        %p291 = pneg %p93
        %p292 = scmp.lt.s32.totalorder %s25, 2
        %s293 = scalar_select %p292, %s25, 2
        %s294 = smul.addr %s293, 4
        %s295 = smul.addr %s294, 4
        %s296 = scalar_lea.vmem %s3, %s295
        %p297 = pneg %p122
        %p298 = pneg %p119
        %s299 = sand.u32 %s135, 1
        %s300 = scalar_lea.sflag [#allocation8], %s299
        %s301 = sand.u32 %s135, 1
        %s302 = smul.addr %s301, 16
        %s303 = scalar_lea.vmem [#allocation7], %s302
        %p304 = pneg %p148
        %p305 = pneg %p145
        %p306 = scmp.lt.s32.totalorder %s25, 2
        %s307 = scalar_select %p306, %s25, 2
        %s308 = smul.addr %s307, 4
        %s309 = scalar_lea.vmem %s5, %s308
        %p310 = pneg %p174
        %p311 = pneg %p171
        %p312 = pneg %p195
        %p313 = pneg %p192
        %s314 = smul.u32 2, %s26
        %p315 = scmp.lt.s32.totalorder %s314, 3
        %s316 = scalar_select %p315, %s314, 3
        %s317 = smul.addr %s316, 8
        %s318 = scalar_lea.vmem %s0, %s317
        %s319 = smul.u32 2, %s26
        %p320 = scmp.lt.s32.totalorder %s25, 2
        %s321 = scalar_select %p320, %s25, 2
        %s322 = smul.addr %s321, 4
        %s323 = smul.addr %s322, 4
        %s324 = scalar_lea.vmem %s3, %s323
        %p325 = scmp.lt.s32.totalorder %s25, 2
        %s326 = scalar_select %p325, %s25, 2
        %s327 = smul.addr %s326, 4
        %s328 = scalar_lea.vmem %s5, %s327
        %p330 = scmp.eq.s32.totalorder %s25, 0
        %p331 = scmp.eq.s32.totalorder %s26, 0
        %p332 = pnand %p330, %p331
        %p333 = pneg %p332
        // Predicated region
        $region49: #{tpu_custom_call.1} parent=43 // pred_check
          _
        $region50: #{tpu_custom_call.1} parent=43 // pred_check_branch
          %335 = sbr.rel (%p332) target = $region52
        $region51: #{tpu_custom_call.1} parent=43 // pred_region
          %v336 = vld [vmem:[%s1] sm:$0xf]
          %v337 = vld [vmem:[%s1 + $0x4] sm:$0xf]
          %v338 = vld [vmem:[%s1 + $0x8] sm:$0xf]
          %v339 = vld [vmem:[%s1 + $0xc] sm:$0xf]
          %v340 = vld [vmem:[%s1 + $0x10] sm:$0xf]
          %v341 = vld [vmem:[%s1 + $0x14] sm:$0xf]
          %v342 = vld [vmem:[%s1 + $0x18] sm:$0xf]
          %v343 = vld [vmem:[%s1 + $0x1c] sm:$0xf]
          %v344 = vld [vmem:[%s1 + $0x20] sm:$0xf]
          %v345 = vld [vmem:[%s1 + $0x24] sm:$0xf]
          %v346 = vld [vmem:[%s1 + $0x28] sm:$0xf]
          %v347 = vld [vmem:[%s1 + $0x2c] sm:$0xf]
          %v348 = vld [vmem:[%s1 + $0x30] sm:$0xf]
          %v349 = vld [vmem:[%s1 + $0x34] sm:$0xf]
          %v350 = vld [vmem:[%s1 + $0x38] sm:$0xf]
          %v351 = vld [vmem:[%s1 + $0x3c] sm:$0xf]
          %v368 = vunpack.c.l.b16 %v336
          %v369 = vunpack.c.l.b16 %v337
          %v370 = vunpack.c.l.b16 %v338
          %v371 = vunpack.c.l.b16 %v339
          %v372 = vunpack.c.l.b16 %v340
          %v373 = vunpack.c.l.b16 %v341
          %v374 = vunpack.c.l.b16 %v342
          %v375 = vunpack.c.l.b16 %v343
          %v376 = vunpack.c.l.b16 %v344
          %v377 = vunpack.c.l.b16 %v345
          %v378 = vunpack.c.l.b16 %v346
          %v379 = vunpack.c.l.b16 %v347
          %v380 = vunpack.c.l.b16 %v348
          %v381 = vunpack.c.l.b16 %v349
          %v382 = vunpack.c.l.b16 %v350
          %v383 = vunpack.c.l.b16 %v351
          %v384 = vpack.c.b16 %v369, %v368
          %v385 = vpack.c.b16 %v371, %v370
          %v386 = vpack.c.b16 %v373, %v372
          %v387 = vpack.c.b16 %v375, %v374
          %v388 = vpack.c.b16 %v377, %v376
          %v389 = vpack.c.b16 %v379, %v378
          %v390 = vpack.c.b16 %v381, %v380
          %v391 = vpack.c.b16 %v383, %v382
          %vm400 = vcmask 261120
          %401 = vst.msk [vmem:[#allocation2] sm:$0xff] %vm400, %v384
          %402 = vst.msk [vmem:[#allocation2 + $0x8] sm:$0xff] %vm400, %v385
          %403 = vst.msk [vmem:[#allocation2 + $0x10] sm:$0xff] %vm400, %v386
          %404 = vst.msk [vmem:[#allocation2 + $0x18] sm:$0xff] %vm400, %v387
          %405 = vst.msk [vmem:[#allocation2 + $0x20] sm:$0xff] %vm400, %v388
          %406 = vst.msk [vmem:[#allocation2 + $0x28] sm:$0xff] %vm400, %v389
          %407 = vst.msk [vmem:[#allocation2 + $0x30] sm:$0xff] %vm400, %v390
          %408 = vst.msk [vmem:[#allocation2 + $0x38] sm:$0xff] %vm400, %v391
        $region52: #{tpu_custom_call.1} parent=43 // pred_fallthru
          _
        // Predicated region
        $region53: #{tpu_custom_call.1} parent=43 // pred_check
          %p409 = pneg %p331
        $region54: #{tpu_custom_call.1} parent=43 // pred_check_branch
          %411 = sbr.rel (%p409) target = $region56
        $region55: #{tpu_custom_call.1} parent=43 // pred_region
          %vm412 = vcmask 253952
          %413 = vst.msk [vmem:[#allocation4] sm:$0x1] %vm412, 0.0
          %414 = vst.msk [vmem:[#allocation5] sm:$0x1] %vm412, 0.0
        $region56: #{tpu_custom_call.1} parent=43 // pred_fallthru
          _
        %v415 = vld [vmem:[%s318] sm:$0xff]
        %v416 = vld [vmem:[%s318 + $0x8] sm:$0xff]
        %v417 = vunpack.c.l.s8.bf16 %v415
        %v418 = vunpack.c.h.s8.bf16 %v415
        %v419 = vunpack.c.l.s8.bf16 %v416
        %v420 = vunpack.c.h.s8.bf16 %v416
        %v421 = vld [vmem:[#allocation2] sm:$0xff]
        %v422 = vld [vmem:[#allocation2 + $0x8] sm:$0xff]
        %v423 = vld [vmem:[#allocation2 + $0x10] sm:$0xff]
        %v424 = vld [vmem:[#allocation2 + $0x18] sm:$0xff]
        %v425 = vld [vmem:[#allocation2 + $0x20] sm:$0xff]
        %v426 = vld [vmem:[#allocation2 + $0x28] sm:$0xff]
        %v427 = vld [vmem:[#allocation2 + $0x30] sm:$0xff]
        %v428 = vld [vmem:[#allocation2 + $0x38] sm:$0xff]
        %429 = vmatprep.subr.bf16.mxu0 0
        %430 = vmatpush1.bf16.msra.mxu0 %v421
        %431 = vmatprep.subr.bf16.mxu0 0
        %432 = vmatpush1.bf16.msra.mxu0 %v422
        %433 = vmatprep.subr.bf16.mxu0 0
        %434 = vmatpush1.bf16.msra.mxu0 %v423
        %435 = vmatprep.subr.bf16.mxu0 0
        %436 = vmatpush1.bf16.msra.mxu0 %v424
        %437 = vmatprep.subr.bf16.mxu0 0
        %438 = vmatpush1.bf16.msra.mxu0 %v425
        %439 = vmatprep.subr.bf16.mxu0 0
        %440 = vmatpush1.bf16.msra.mxu0 %v426
        %441 = vmatprep.subr.bf16.mxu0 0
        %442 = vmatpush1.bf16.msra.mxu0 %v427
        %443 = vmatprep.subr.bf16.mxu0 0
        %444 = vmatpush1.bf16.msra.mxu0 %v428
        %445 = vmatprep.subr.bf16.mxu0 0
        %446 = vmatpush1.bf16.msra.mxu0 0
        %447 = vmatprep.subr.bf16.mxu0 0
        %448 = vmatpush1.bf16.msra.mxu0 0
        %449 = vmatprep.subr.bf16.mxu0 0
        %450 = vmatpush1.bf16.msra.mxu0 0
        %451 = vmatprep.subr.bf16.mxu0 0
        %452 = vmatpush1.bf16.msra.mxu0 0
        %453 = vmatprep.subr.bf16.mxu0 0
        %454 = vmatpush1.bf16.msra.mxu0 0
        %455 = vmatprep.subr.bf16.mxu0 0
        %456 = vmatpush1.bf16.msra.mxu0 0
        %457 = vmatprep.subr.bf16.mxu0 0
        %458 = vmatpush1.bf16.msra.mxu0 0
        %459 = vmatprep.subr.bf16.mxu0 0
        %460 = vmatpush1.bf16.msra.mxu0 0
        %461 = vmatprep.mubr.bf16.mxu0 0
        %462 = vmatmul.mubr.bf16.gmra.mrb[0].mxu0 %v417
        %v463 = vpop.f32.mrb[0].mxu0
        %v464 = vadd.f32 0.0, %v463
        %v465 = vpop.f32.mrb[0].mxu0
        %v466 = vpop.f32.mrb[0].mxu0
        %v467 = vadd.f32 0.0, %v466
        %v468 = vpop.f32.mrb[0].mxu0
        %469 = vmatprep.mubr.bf16.mxu0 0
        %470 = vmatmul.mubr.bf16.gmra.mrb[0].mxu0 %v418
        %v471 = vpop.f32.mrb[0].mxu0
        %v472 = vadd.f32 0.0, %v471
        %v473 = vpop.f32.mrb[0].mxu0
        %v474 = vpop.f32.mrb[0].mxu0
        %v475 = vadd.f32 0.0, %v474
        %v476 = vpop.f32.mrb[0].mxu0
        %477 = vmatprep.mubr.bf16.mxu0 0
        %478 = vmatmul.mubr.bf16.gmra.mrb[0].mxu0 %v419
        %v479 = vpop.f32.mrb[0].mxu0
        %v480 = vadd.f32 0.0, %v479
        %v481 = vpop.f32.mrb[0].mxu0
        %v482 = vpop.f32.mrb[0].mxu0
        %v483 = vadd.f32 0.0, %v482
        %v484 = vpop.f32.mrb[0].mxu0
        %485 = vmatprep.mubr.bf16.mxu0 0
        %486 = vmatmul.mubr.bf16.gmra.mrb[0].mxu0 %v420
        %v487 = vpop.f32.mrb[0].mxu0
        %v488 = vadd.f32 0.0, %v487
        %v489 = vpop.f32.mrb[0].mxu0
        %v490 = vpop.f32.mrb[0].mxu0
        %v491 = vadd.f32 0.0, %v490
        %v492 = vpop.f32.mrb[0].mxu0
        %493 = vdwg.mxu0
        %v494 = vpack.c.bf16 %v467, %v464
        %v495 = vpack.c.bf16 %v475, %v472
        %v496 = vpack.c.bf16 %v483, %v480
        %v497 = vpack.c.bf16 %v491, %v488
        %v498 = vld [vmem:[%s324] sm:$0xf]
        %v499 = vld [vmem:[%s324 + $0x4] sm:$0xf]
        %v500 = vld [vmem:[%s324 + $0x8] sm:$0xf]
        %v501 = vld [vmem:[%s324 + $0xc] sm:$0xf]
        %v502 = vld [vmem:[%s328] sm:$0x1]
        %v503 = vlaneseq
        %v504 = vshrl.u32 %v503, 7
        %v505 = vsub.s32 0, %v504
        %v506 = vrot.slane %v502, %v505
        %v511 = vunpack.c.l.b16 %v498
        %v512 = vunpack.c.l.b16 %v499
        %v513 = vunpack.c.l.b16 %v500
        %v514 = vunpack.c.l.b16 %v501
        %v515 = vpack.c.b16 %v512, %v511
        %v516 = vpack.c.b16 %v514, %v513
        %vm519 = vcmask 261120
        %v521 = vsel %vm519, %v494, 0
        %v524 = vsel %vm519, %v495, 0
        %v527 = vsel %vm519, %v496, 0
        %v530 = vsel %vm519, %v497, 0
        %532 = vmatprep.subr.bf16.mxu0 0
        %533 = vmatpush1.bf16.msra.mxu0 %v515
        %534 = vmatprep.subr.bf16.mxu0 0
        %535 = vmatpush1.bf16.msra.mxu0 %v516
        %536 = vmatprep.subr.bf16.mxu0 0
        %537 = vmatpush1.bf16.msra.mxu0 0
        %538 = vmatprep.subr.bf16.mxu0 0
        %539 = vmatpush1.bf16.msra.mxu0 0
        %540 = vmatprep.subr.bf16.mxu0 0
        %541 = vmatpush1.bf16.msra.mxu0 0
        %542 = vmatprep.subr.bf16.mxu0 0
        %543 = vmatpush1.bf16.msra.mxu0 0
        %544 = vmatprep.subr.bf16.mxu0 0
        %545 = vmatpush1.bf16.msra.mxu0 0
        %546 = vmatprep.subr.bf16.mxu0 0
        %547 = vmatpush1.bf16.msra.mxu0 0
        %548 = vmatprep.subr.bf16.mxu0 0
        %549 = vmatpush1.bf16.msra.mxu0 0
        %550 = vmatprep.subr.bf16.mxu0 0
        %551 = vmatpush1.bf16.msra.mxu0 0
        %552 = vmatprep.subr.bf16.mxu0 0
        %553 = vmatpush1.bf16.msra.mxu0 0
        %554 = vmatprep.subr.bf16.mxu0 0
        %555 = vmatpush1.bf16.msra.mxu0 0
        %556 = vmatprep.subr.bf16.mxu0 0
        %557 = vmatpush1.bf16.msra.mxu0 0
        %558 = vmatprep.subr.bf16.mxu0 0
        %559 = vmatpush1.bf16.msra.mxu0 0
        %560 = vmatprep.subr.bf16.mxu0 0
        %561 = vmatpush1.bf16.msra.mxu0 0
        %562 = vmatprep.subr.bf16.mxu0 0
        %563 = vmatpush1.bf16.msra.mxu0 0
        %564 = vmatprep.mubr.bf16.mxu0 0
        %565 = vmatmul.mubr.bf16.gmra.mrb[0].mxu0 %v521
        %v566 = vpop.f32.mrb[0].mxu0
        %v567 = vadd.f32 %v506, %v566
        %v568 = vpop.f32.mrb[0].mxu0
        %v569 = vpop.f32.mrb[0].mxu0
        %v570 = vadd.f32 %v506, %v569
        %v571 = vpop.f32.mrb[0].mxu0
        %572 = vmatprep.mubr.bf16.mxu0 0
        %573 = vmatmul.mubr.bf16.gmra.mrb[0].mxu0 %v524
        %v574 = vpop.f32.mrb[0].mxu0
        %v575 = vadd.f32 %v506, %v574
        %v576 = vpop.f32.mrb[0].mxu0
        %v577 = vpop.f32.mrb[0].mxu0
        %v578 = vadd.f32 %v506, %v577
        %v579 = vpop.f32.mrb[0].mxu0
        %580 = vmatprep.mubr.bf16.mxu0 0
        %581 = vmatmul.mubr.bf16.gmra.mrb[0].mxu0 %v527
        %v582 = vpop.f32.mrb[0].mxu0
        %v583 = vadd.f32 %v506, %v582
        %v584 = vpop.f32.mrb[0].mxu0
        %v585 = vpop.f32.mrb[0].mxu0
        %v586 = vadd.f32 %v506, %v585
        %v587 = vpop.f32.mrb[0].mxu0
        %588 = vmatprep.mubr.bf16.mxu0 0
        %589 = vmatmul.mubr.bf16.gmra.mrb[0].mxu0 %v530
        %v590 = vpop.f32.mrb[0].mxu0
        %v591 = vadd.f32 %v506, %v590
        %v592 = vpop.f32.mrb[0].mxu0
        %v593 = vpop.f32.mrb[0].mxu0
        %v594 = vadd.f32 %v506, %v593
        %v595 = vpop.f32.mrb[0].mxu0
        %596 = vdwg.mxu0
        %v597 = vmax.f32 %v567, 0.0
        %v598 = vmax.f32 %v570, 0.0
        %v599 = vmax.f32 %v575, 0.0
        %v600 = vmax.f32 %v578, 0.0
        %v601 = vmax.f32 %v583, 0.0
        %v602 = vmax.f32 %v586, 0.0
        %v603 = vmax.f32 %v591, 0.0
        %v604 = vmax.f32 %v594, 0.0
        %v605 = vpack.c.bf16 %v598, %v597
        %v606 = vpack.c.bf16 %v600, %v599
        %v607 = vpack.c.bf16 %v602, %v601
        %v608 = vpack.c.bf16 %v604, %v603
        %v609 = vld [vmem:[%s276] sm:$0xf]
        %v610 = vld [vmem:[%s276 + $0x4] sm:$0xf]
        %v611 = vld [vmem:[%s276 + $0x8] sm:$0xf]
        %v612 = vld [vmem:[%s276 + $0xc] sm:$0xf]
        %v613 = vld [vmem:[%s328 + $0x1] sm:$0x1]
        %v614 = vlaneseq
        %v615 = vshrl.u32 %v614, 7
        %v616 = vsub.s32 0, %v615
        %v617 = vrot.slane %v613, %v616
        %v622 = vunpack.c.l.b16 %v609
        %v623 = vunpack.c.l.b16 %v610
        %v624 = vunpack.c.l.b16 %v611
        %v625 = vunpack.c.l.b16 %v612
        %v626 = vpack.c.b16 %v623, %v622
        %v627 = vpack.c.b16 %v625, %v624
        %v631 = vsel %vm519, %v605, 0
        %v634 = vsel %vm519, %v606, 0
        %v637 = vsel %vm519, %v607, 0
        %v640 = vsel %vm519, %v608, 0
        %642 = vmatprep.subr.bf16.mxu0 0
        %643 = vmatpush1.bf16.msra.mxu0 %v626
        %644 = vmatprep.subr.bf16.mxu0 0
        %645 = vmatpush1.bf16.msra.mxu0 %v627
        %646 = vmatprep.subr.bf16.mxu0 0
        %647 = vmatpush1.bf16.msra.mxu0 0
        %648 = vmatprep.subr.bf16.mxu0 0
        %649 = vmatpush1.bf16.msra.mxu0 0
        %650 = vmatprep.subr.bf16.mxu0 0
        %651 = vmatpush1.bf16.msra.mxu0 0
        %652 = vmatprep.subr.bf16.mxu0 0
        %653 = vmatpush1.bf16.msra.mxu0 0
        %654 = vmatprep.subr.bf16.mxu0 0
        %655 = vmatpush1.bf16.msra.mxu0 0
        %656 = vmatprep.subr.bf16.mxu0 0
        %657 = vmatpush1.bf16.msra.mxu0 0
        %658 = vmatprep.subr.bf16.mxu0 0
        %659 = vmatpush1.bf16.msra.mxu0 0
        %660 = vmatprep.subr.bf16.mxu0 0
        %661 = vmatpush1.bf16.msra.mxu0 0
        %662 = vmatprep.subr.bf16.mxu0 0
        %663 = vmatpush1.bf16.msra.mxu0 0
        %664 = vmatprep.subr.bf16.mxu0 0
        %665 = vmatpush1.bf16.msra.mxu0 0
        %666 = vmatprep.subr.bf16.mxu0 0
        %667 = vmatpush1.bf16.msra.mxu0 0
        %668 = vmatprep.subr.bf16.mxu0 0
        %669 = vmatpush1.bf16.msra.mxu0 0
        %670 = vmatprep.subr.bf16.mxu0 0
        %671 = vmatpush1.bf16.msra.mxu0 0
        %672 = vmatprep.subr.bf16.mxu0 0
        %673 = vmatpush1.bf16.msra.mxu0 0
        %674 = vmatprep.mubr.bf16.mxu0 0
        %675 = vmatmul.mubr.bf16.gmra.mrb[0].mxu0 %v631
        %v676 = vpop.f32.mrb[0].mxu0
        %v677 = vadd.f32 %v617, %v676
        %v678 = vpop.f32.mrb[0].mxu0
        %v679 = vpop.f32.mrb[0].mxu0
        %v680 = vadd.f32 %v617, %v679
        %v681 = vpop.f32.mrb[0].mxu0
        %682 = vmatprep.mubr.bf16.mxu0 0
        %683 = vmatmul.mubr.bf16.gmra.mrb[0].mxu0 %v634
        %v684 = vpop.f32.mrb[0].mxu0
        %v685 = vadd.f32 %v617, %v684
        %v686 = vpop.f32.mrb[0].mxu0
        %v687 = vpop.f32.mrb[0].mxu0
        %v688 = vadd.f32 %v617, %v687
        %v689 = vpop.f32.mrb[0].mxu0
        %690 = vmatprep.mubr.bf16.mxu0 0
        %691 = vmatmul.mubr.bf16.gmra.mrb[0].mxu0 %v637
        %v692 = vpop.f32.mrb[0].mxu0
        %v693 = vadd.f32 %v617, %v692
        %v694 = vpop.f32.mrb[0].mxu0
        %v695 = vpop.f32.mrb[0].mxu0
        %v696 = vadd.f32 %v617, %v695
        %v697 = vpop.f32.mrb[0].mxu0
        %698 = vmatprep.mubr.bf16.mxu0 0
        %699 = vmatmul.mubr.bf16.gmra.mrb[0].mxu0 %v640
        %v700 = vpop.f32.mrb[0].mxu0
        %v701 = vadd.f32 %v617, %v700
        %v702 = vpop.f32.mrb[0].mxu0
        %v703 = vpop.f32.mrb[0].mxu0
        %v704 = vadd.f32 %v617, %v703
        %v705 = vpop.f32.mrb[0].mxu0
        %706 = vdwg.mxu0
        %v707 = vmax.f32 %v677, 0.0
        %v708 = vmax.f32 %v680, 0.0
        %v709 = vmax.f32 %v685, 0.0
        %v710 = vmax.f32 %v688, 0.0
        %v711 = vmax.f32 %v693, 0.0
        %v712 = vmax.f32 %v696, 0.0
        %v713 = vmax.f32 %v701, 0.0
        %v714 = vmax.f32 %v704, 0.0
        %s715 = smul.u32 %s26, 64
        %s716 = scalar_lea.vmem [#allocation3], %s715
        %717 = vst.msk [vmem:[%s716] sm:$0xff] %vm519, %v707
        %718 = vst.msk [vmem:[%s716 + $0x8] sm:$0xff] %vm519, %v708
        %719 = vst.msk [vmem:[%s716 + $0x10] sm:$0xff] %vm519, %v709
        %720 = vst.msk [vmem:[%s716 + $0x18] sm:$0xff] %vm519, %v710
        %721 = vst.msk [vmem:[%s716 + $0x20] sm:$0xff] %vm519, %v711
        %722 = vst.msk [vmem:[%s716 + $0x28] sm:$0xff] %vm519, %v712
        %723 = vst.msk [vmem:[%s716 + $0x30] sm:$0xff] %vm519, %v713
        %724 = vst.msk [vmem:[%s716 + $0x38] sm:$0xff] %vm519, %v714
        %v725 = vld [vmem:[#allocation4] sm:$0x1]
        %v726 = vsel %vm519, %v707, 0.0
        %v727 = vsel %vm519, %v708, 0.0
        %v728 = vadd.f32 %v726, %v727
        %v729 = vsel %vm519, %v709, 0.0
        %v730 = vadd.f32 %v728, %v729
        %v731 = vsel %vm519, %v710, 0.0
        %v732 = vadd.f32 %v730, %v731
        %v733 = vsel %vm519, %v711, 0.0
        %v734 = vadd.f32 %v732, %v733
        %v735 = vsel %vm519, %v712, 0.0
        %v736 = vadd.f32 %v734, %v735
        %v737 = vsel %vm519, %v713, 0.0
        %v738 = vadd.f32 %v736, %v737
        %v739 = vsel %vm519, %v714, 0.0
        %v740 = vadd.f32 %v738, %v739
        %v741 = vrot.slane %v740, 4
        %v742 = vadd.f32 %v740, %v741
        %v743 = vrot.slane %v742, 2
        %v744 = vadd.f32 %v742, %v743
        %v745 = vrot.slane %v744, 1
        %v746 = vadd.f32 %v744, %v745
        %v747 = vadd.f32 %v725, %v746
        %vm748 = vcmask 253952
        %749 = vst.msk [vmem:[#allocation4] sm:$0x1] %vm748, %v747
        %v750 = vld [vmem:[#allocation5] sm:$0x1]
        %v751 = vmul.f32 %v707, %v707
        %v752 = vmul.f32 %v708, %v708
        %v753 = vmul.f32 %v709, %v709
        %v754 = vmul.f32 %v710, %v710
        %v755 = vmul.f32 %v711, %v711
        %v756 = vmul.f32 %v712, %v712
        %v757 = vmul.f32 %v713, %v713
        %v758 = vmul.f32 %v714, %v714
        %v759 = vsel %vm519, %v751, 0.0
        %v760 = vsel %vm519, %v752, 0.0
        %v761 = vadd.f32 %v759, %v760
        %v762 = vsel %vm519, %v753, 0.0
        %v763 = vadd.f32 %v761, %v762
        %v764 = vsel %vm519, %v754, 0.0
        %v765 = vadd.f32 %v763, %v764
        %v766 = vsel %vm519, %v755, 0.0
        %v767 = vadd.f32 %v765, %v766
        %v768 = vsel %vm519, %v756, 0.0
        %v769 = vadd.f32 %v767, %v768
        %v770 = vsel %vm519, %v757, 0.0
        %v771 = vadd.f32 %v769, %v770
        %v772 = vsel %vm519, %v758, 0.0
        %v773 = vadd.f32 %v771, %v772
        %v774 = vrot.slane %v773, 4
        %v775 = vadd.f32 %v773, %v774
        %v776 = vrot.slane %v775, 2
        %v777 = vadd.f32 %v775, %v776
        %v778 = vrot.slane %v777, 1
        %v779 = vadd.f32 %v777, %v778
        %v780 = vadd.f32 %v750, %v779
        %781 = vst.msk [vmem:[#allocation5] sm:$0x1] %vm748, %v780
        %p782 = scmp.eq.s32.totalorder %s26, 1
        // Predicated region
        $region57: #{tpu_custom_call.1} parent=43 // pred_check
          %p783 = pneg %p782
        $region58: #{tpu_custom_call.1} parent=43 // pred_check_branch
          %785 = sbr.rel (%p783) target = $region60
        $region59: #{tpu_custom_call.1} parent=43 // pred_region
          %v786 = vld [vmem:[#allocation4] sm:$0x1]
          %v787 = vmul.f32 %v786, 0.0078125
          %v788 = vld [vmem:[#allocation5] sm:$0x1]
          %v789 = vmul.f32 %v788, 0.0078125
          %v790 = vmul.f32 %v787, %v787
          %v791 = vsub.f32 %v789, %v790
          %v792 = vmax.f32 %v791, 0.0
          %v793 = vld [vmem:[%s328 + $0x2] sm:$0x1]
          %v794 = vld [vmem:[%s328 + $0x3] sm:$0x1]
          %v795 = vld [vmem:[#allocation3] sm:$0xff]
          %v796 = vld [vmem:[#allocation3 + $0x8] sm:$0xff]
          %v797 = vld [vmem:[#allocation3 + $0x10] sm:$0xff]
          %v798 = vld [vmem:[#allocation3 + $0x18] sm:$0xff]
          %v799 = vld [vmem:[#allocation3 + $0x20] sm:$0xff]
          %v800 = vld [vmem:[#allocation3 + $0x28] sm:$0xff]
          %v801 = vld [vmem:[#allocation3 + $0x30] sm:$0xff]
          %v802 = vld [vmem:[#allocation3 + $0x38] sm:$0xff]
          %v803 = vld [vmem:[#allocation3 + $0x40] sm:$0xff]
          %v804 = vld [vmem:[#allocation3 + $0x48] sm:$0xff]
          %v805 = vld [vmem:[#allocation3 + $0x50] sm:$0xff]
          %v806 = vld [vmem:[#allocation3 + $0x58] sm:$0xff]
          %v807 = vld [vmem:[#allocation3 + $0x60] sm:$0xff]
          %v808 = vld [vmem:[#allocation3 + $0x68] sm:$0xff]
          %v809 = vld [vmem:[#allocation3 + $0x70] sm:$0xff]
          %v810 = vld [vmem:[#allocation3 + $0x78] sm:$0xff]
          %v812 = vlaneseq
          %v813 = vshrl.u32 %v812, 7
          %v814 = vsub.s32 0, %v813
          %v815 = vrot.slane %v787, %v814
          %v817 = vsub.f32 %v795, %v815
          %v818 = vsub.f32 %v796, %v815
          %v819 = vsub.f32 %v797, %v815
          %v820 = vsub.f32 %v798, %v815
          %v821 = vsub.f32 %v799, %v815
          %v822 = vsub.f32 %v800, %v815
          %v823 = vsub.f32 %v801, %v815
          %v824 = vsub.f32 %v802, %v815
          %v825 = vsub.f32 %v803, %v815
          %v826 = vsub.f32 %v804, %v815
          %v827 = vsub.f32 %v805, %v815
          %v828 = vsub.f32 %v806, %v815
          %v829 = vsub.f32 %v807, %v815
          %v830 = vsub.f32 %v808, %v815
          %v831 = vsub.f32 %v809, %v815
          %v832 = vsub.f32 %v810, %v815
          %v833 = vadd.f32 %v792, 1e-05
          %v834 = vrsqrt.pop %v833
          %v836 = vlaneseq
          %v837 = vshrl.u32 %v836, 7
          %v838 = vsub.s32 0, %v837
          %v839 = vrot.slane %v834, %v838
          %v841 = vmul.f32 %v817, %v839
          %v842 = vmul.f32 %v818, %v839
          %v843 = vmul.f32 %v819, %v839
          %v844 = vmul.f32 %v820, %v839
          %v845 = vmul.f32 %v821, %v839
          %v846 = vmul.f32 %v822, %v839
          %v847 = vmul.f32 %v823, %v839
          %v848 = vmul.f32 %v824, %v839
          %v849 = vmul.f32 %v825, %v839
          %v850 = vmul.f32 %v826, %v839
          %v851 = vmul.f32 %v827, %v839
          %v852 = vmul.f32 %v828, %v839
          %v853 = vmul.f32 %v829, %v839
          %v854 = vmul.f32 %v830, %v839
          %v855 = vmul.f32 %v831, %v839
          %v856 = vmul.f32 %v832, %v839
          %v857 = vlaneseq
          %v858 = vshrl.u32 %v857, 7
          %v859 = vsub.s32 0, %v858
          %v860 = vrot.slane %v793, %v859
          %v861 = vmul.f32 %v841, %v860
          %v862 = vmul.f32 %v842, %v860
          %v863 = vmul.f32 %v843, %v860
          %v864 = vmul.f32 %v844, %v860
          %v865 = vmul.f32 %v845, %v860
          %v866 = vmul.f32 %v846, %v860
          %v867 = vmul.f32 %v847, %v860
          %v868 = vmul.f32 %v848, %v860
          %v869 = vmul.f32 %v849, %v860
          %v870 = vmul.f32 %v850, %v860
          %v871 = vmul.f32 %v851, %v860
          %v872 = vmul.f32 %v852, %v860
          %v873 = vmul.f32 %v853, %v860
          %v874 = vmul.f32 %v854, %v860
          %v875 = vmul.f32 %v855, %v860
          %v876 = vmul.f32 %v856, %v860
          %v877 = vlaneseq
          %v878 = vshrl.u32 %v877, 7
          %v879 = vsub.s32 0, %v878
          %v880 = vrot.slane %v794, %v879
          %v881 = vadd.f32 %v861, %v880
          %v882 = vadd.f32 %v862, %v880
          %v883 = vadd.f32 %v863, %v880
          %v884 = vadd.f32 %v864, %v880
          %v885 = vadd.f32 %v865, %v880
          %v886 = vadd.f32 %v866, %v880
          %v887 = vadd.f32 %v867, %v880
          %v888 = vadd.f32 %v868, %v880
          %v889 = vadd.f32 %v869, %v880
          %v890 = vadd.f32 %v870, %v880
          %v891 = vadd.f32 %v871, %v880
          %v892 = vadd.f32 %v872, %v880
          %v893 = vadd.f32 %v873, %v880
          %v894 = vadd.f32 %v874, %v880
          %v895 = vadd.f32 %v875, %v880
          %v896 = vadd.f32 %v876, %v880
          %v897 = vpack.c.bf16 %v882, %v881
          %v898 = vpack.c.bf16 %v884, %v883
          %v899 = vpack.c.bf16 %v886, %v885
          %v900 = vpack.c.bf16 %v888, %v887
          %v901 = vpack.c.bf16 %v890, %v889
          %v902 = vpack.c.bf16 %v892, %v891
          %v903 = vpack.c.bf16 %v894, %v893
          %v904 = vpack.c.bf16 %v896, %v895
          %v905 = vld [vmem:[%s2] sm:$0x3]
          %906 = vmatprep.subr.bf16.mxu0 0
          %907 = vmatpush1.bf16.msra.mxu0 %v897
          %908 = vmatprep.subr.bf16.mxu0 0
          %909 = vmatpush1.bf16.msra.mxu0 %v898
          %910 = vmatprep.subr.bf16.mxu0 0
          %911 = vmatpush1.bf16.msra.mxu0 %v899
          %912 = vmatprep.subr.bf16.mxu0 0
          %913 = vmatpush1.bf16.msra.mxu0 %v900
          %914 = vmatprep.subr.bf16.mxu0 0
          %915 = vmatpush1.bf16.msra.mxu0 %v901
          %916 = vmatprep.subr.bf16.mxu0 0
          %917 = vmatpush1.bf16.msra.mxu0 %v902
          %918 = vmatprep.subr.bf16.mxu0 0
          %919 = vmatpush1.bf16.msra.mxu0 %v903
          %920 = vmatprep.subr.bf16.mxu0 0
          %921 = vmatpush1.bf16.msra.mxu0 %v904
          %922 = vmatprep.subr.bf16.mxu0 0
          %923 = vmatpush1.bf16.msra.mxu0 0
          %924 = vmatprep.subr.bf16.mxu0 0
          %925 = vmatpush1.bf16.msra.mxu0 0
          %926 = vmatprep.subr.bf16.mxu0 0
          %927 = vmatpush1.bf16.msra.mxu0 0
          %928 = vmatprep.subr.bf16.mxu0 0
          %929 = vmatpush1.bf16.msra.mxu0 0
          %930 = vmatprep.subr.bf16.mxu0 0
          %931 = vmatpush1.bf16.msra.mxu0 0
          %932 = vmatprep.subr.bf16.mxu0 0
          %933 = vmatpush1.bf16.msra.mxu0 0
          %934 = vmatprep.subr.bf16.mxu0 0
          %935 = vmatpush1.bf16.msra.mxu0 0
          %936 = vmatprep.subr.bf16.mxu0 0
          %937 = vmatpush1.bf16.msra.mxu0 0
          %938 = vmatprep.mubr.bf16.mxu0 0
          %939 = vmatmul.mubr.bf16.gmra.mrb[0].mxu0 %v905
          %v940 = vpop.f32.mrb[0].mxu0
          %v941 = vadd.f32 0.0, %v940
          %v942 = vpop.f32.mrb[0].mxu0
          %v943 = vpop.f32.mrb[0].mxu0
          %v944 = vpop.f32.mrb[0].mxu0
          %945 = vdwg.mxu0
          %s946 = smul.u32 %s25, 4
          %s947 = scalar_lea.vmem [#allocation6], %s946
          %vm948 = vcmask 257024
          %949 = vst.msk [vmem:[%s947] sm:$0xf] %vm948, %v941
          %950 = vst.msk [vmem:[#allocation2] sm:$0xff] %vm519, %v897
          %951 = vst.msk [vmem:[#allocation2 + $0x8] sm:$0xff] %vm519, %v898
          %952 = vst.msk [vmem:[#allocation2 + $0x10] sm:$0xff] %vm519, %v899
          %953 = vst.msk [vmem:[#allocation2 + $0x18] sm:$0xff] %vm519, %v900
          %954 = vst.msk [vmem:[#allocation2 + $0x20] sm:$0xff] %vm519, %v901
          %955 = vst.msk [vmem:[#allocation2 + $0x28] sm:$0xff] %vm519, %v902
          %956 = vst.msk [vmem:[#allocation2 + $0x30] sm:$0xff] %vm519, %v903
          %957 = vst.msk [vmem:[#allocation2 + $0x38] sm:$0xff] %vm519, %v904
        $region60: #{tpu_custom_call.1} parent=43 // pred_fallthru
          _
        %p958 = scmp.eq.s32.totalorder %s25, 2
        %p959 = pnand %p958, %p782
        %p960 = pneg %p959
        // Predicated region
        $region61: #{tpu_custom_call.1} parent=43 // pred_check
          _
        $region62: #{tpu_custom_call.1} parent=43 // pred_check_branch
          %962 = sbr.rel (%p959) target = $region64
        $region63: #{tpu_custom_call.1} parent=43 // pred_region
          %v963 = vld [vmem:[#allocation6] sm:$0xf]
          %s964 = scalar_lea.vmem [#allocation6], 4
          %v965 = vld [vmem:[%s964] sm:$0xf]
          %s966 = scalar_lea.vmem [#allocation6], 8
          %v967 = vld [vmem:[%s966] sm:$0xf]
          %969 = vrot.lane.b32.xlu0 %v965, 32
          %v970 = vpop.permute.xlu0 %969
          %973 = vrot.lane.b32.xlu0 %v967, 64
          %v974 = vpop.permute.xlu0 %973
          %v976 = vsel %vm519, %v963, %v970
          %vm977 = vcmask 523264
          %v978 = vsel %vm977, %v976, %v974
          %vm979 = vcmask 785408
          %v980 = vsel %vm979, %v978, 0.0
          %981 = vst [vmem:[#allocation10] sm:$0xf] %v980
        $region64: #{tpu_custom_call.1} parent=43 // pred_fallthru
          _
        // Predicated region
        $region65: #{tpu_custom_call.1} parent=43 // pred_check
          %p982 = pneg %p192
        $region66: #{tpu_custom_call.1} parent=43 // pred_check_branch
          %984 = sbr.rel (%p982) target = $region68
        $region67: #{tpu_custom_call.1} parent=43 // pred_region
          %s986 = ssub.s32 64, 64
          %987 = vsyncadd [#allocation9], %s986
          %s989 = sshll.u32 [#allocation10], 4
          %s990 = int_to_ptr.vmem [resolvable:$true] %s989
          %992 = dma.vmem_to_hbm [thread:$0]  %s990, 64, %s6, [#allocation9]
        $region68: #{tpu_custom_call.1} parent=43 // pred_fallthru
          _
        // Predicated region
        $region69: #{tpu_custom_call.1} parent=43 // pred_check
          %p993 = pneg %p192
        $region70: #{tpu_custom_call.1} parent=43 // pred_check_branch
          %995 = sbr.rel (%p993) target = $region72
        $region71: #{tpu_custom_call.1} parent=43 // pred_region
          %996 = dma.done [#allocation9], 64
        $region72: #{tpu_custom_call.1} parent=43 // pred_fallthru
          _
      $region44: #{tpu_custom_call.1} parent=5 // pred_fallthru
        _
      %p997 = scmp.le.s32.totalorder 2, %s16
      // Predicated region
      $region73: #{tpu_custom_call.1} parent=5 // pred_check
        %p998 = pneg %p997
      $region74: #{tpu_custom_call.1} parent=5 // pred_check_branch
        %1000 = sbr.rel (%p998) target = $region76
      $region75: #{tpu_custom_call.1} parent=5 // pred_region
        %s1001 = ssub.s32 %s16, 2
      $region76: #{tpu_custom_call.1} parent=5 // pred_fallthru
        _
    $region6: #{tpu_custom_call.1} parent=1 // loop_footer
      %s20 = sadd.s32 1, %s16
    $region7: #{tpu_custom_call.1} parent=1 // loop_footer_branch
      %15 = sbr.rel target = $region3
    $region8: #{tpu_custom_call.1} parent=1 // loop_exit
      _
    %1002 = vsyncpa [#allocation8], 1
    %s1003 = scalar_lea.sflag [#allocation8], 1
    %1004 = vsyncpa %s1003, 1
    %1005 = vsyncpa [#allocation9], 1
    %s1006 = scalar_lea.sflag [#allocation9], 1
    %1007 = vsyncpa %s1006, 1

</llo_original>
